<compile_context>
chip_gen: v7x
topology: tpu7x:2x2x1
jax: 0.10.0
libtpu: 0.0.40
codegen_flags: <defaults>
</compile_context>

<pallas_src>
import functools
import math

import jax
import jax.numpy as jnp
from jax.experimental import pallas as pl
from jax.experimental.pallas import tpu as pltpu


def _round_up(x, m):
    return ((x + m - 1) // m) * m


def _cdiv(a, b):
    return -(-a // b)


def _vmem_capacity_bytes():
    """Generation-aware VMEM capacity; safe 64 MiB fallback (v7x lower bound)."""
    try:
        return int(pltpu.get_tpu_info().vmem_capacity_bytes)
    except Exception:
        return 64 * 1024 * 1024


def _pick_ta(ap, ta_max):
    """Largest multiple of 256 that divides the (256-aligned) padded A and is <= ta_max."""
    ta_max = max(256, min(int(ta_max), ap))
    best = 256
    t = 256
    while t <= ta_max:
        if ap % t == 0:
            best = t
        t += 256
    return best


def _spec(shape, index_map, single_buffer):
    """BlockSpec; grid-invariant blocks request a single VMEM buffer."""
    if single_buffer:
        try:
            return pl.BlockSpec(shape, index_map, pipeline_mode=pl.Buffered(1))
        except TypeError:
            pass  # older JAX without pipeline_mode -> default double-buffering
    return pl.BlockSpec(shape, index_map)


def _answer_head_kernel(x_ref, w1_ref, lnp_ref, w2_ref, b2_ref, out_ref, hn_ref,
                        *, h2_true, eps):
    """Grid (i=batch tile, j=answer tile).  Linear1/GeLU/LN once per batch tile."""
    j = pl.program_id(1)

    @pl.when(j == 0)
    def _():
        x = x_ref[...]                                   # (TB, Hp)   bf16
        b1 = lnp_ref[0:1, :]                             # (1, H2p)   f32
        gamma = lnp_ref[1:2, :]
        beta = lnp_ref[2:3, :]

        # ---- Linear 1 (MXU, bf16 x bf16 -> f32 accumulate) ----
        h = jnp.dot(x, w1_ref[...], preferred_element_type=jnp.float32) + b1

        # ---- GeLU (erf formulation; erf/rsqrt run on the EUP slot) ----
        h = h * 0.5 * (1.0 + jax.lax.erf(h * (1.0 / math.sqrt(2.0))))

        # ---- LayerNorm over the true 2H lanes (padded lanes of h are 0) ----
        # One fused pass (sum + sum-of-squares); variance clamped at 0 so f32
        # cancellation can never push rsqrt into NaN territory.
        inv_n = 1.0 / h2_true
        s = jnp.sum(h, axis=-1, keepdims=True)
        ss = jnp.sum(h * h, axis=-1, keepdims=True)
        mean = s * inv_n
        var = jnp.maximum(ss * inv_n - mean * mean, 0.0)
        r = jax.lax.rsqrt(var + eps)
        # NOTE: mean/r are per-row, gamma/beta per-lane, so folding gamma into a
        # precomputed scale/shift would *add* a full-width pass; keep 4 passes.
        hn = (h - mean) * r * gamma + beta               # padded lanes stay 0
        hn_ref[...] = hn.astype(hn_ref.dtype)            # bf16 scratch, reused per j

    # ---- Linear 2 (MXU) over the current answer tile ----
    out = jnp.dot(hn_ref[...], w2_ref[...],
                  preferred_element_type=jnp.float32) + b2_ref[...]
    out_ref[...] = out.astype(out_ref.dtype)


def prepare_params(params, *, matmul_dtype=jnp.bfloat16):
    """Pad + cast the weights ONCE (hoisted out of the per-call path).

    Padding is mathematically inert: padded w1 columns / b1 lanes are zero so
    h==0 there, padded gamma/beta keep hn==0 there, and padded w2 rows/cols are
    zero; LayerNorm statistics divide by the TRUE 2H.
    """
    w1 = jnp.asarray(params["w1"], jnp.float32)          # (H, 2H), (in, out) layout
    w2 = jnp.asarray(params["w2"], jnp.float32)          # (2H, A)
    H, H2 = w1.shape
    A = w2.shape[1]
    Hp = _round_up(H, 128)      # K dim of matmul-1; 128 keeps x HBM traffic low
    H2p = _round_up(H2, 256)    # 256-align for the 2x256^2 MXU (v6e/v7x)
    Ap = _round_up(A, 256)

    w1_p = jnp.zeros((Hp, H2p), matmul_dtype).at[:H, :H2].set(w1.astype(matmul_dtype))
    w2_p = jnp.zeros((H2p, Ap), matmul_dtype).at[:H2, :A].set(w2.astype(matmul_dtype))
    lnp = jnp.zeros((3, H2p), jnp.float32)
    lnp = lnp.at[0, :H2].set(jnp.asarray(params["b1"], jnp.float32).reshape(-1))
    lnp = lnp.at[1, :H2].set(jnp.asarray(params["gamma"], jnp.float32).reshape(-1))
    lnp = lnp.at[2, :H2].set(jnp.asarray(params["beta"], jnp.float32).reshape(-1))
    b2_p = jnp.zeros((1, Ap), jnp.float32).at[0, :A].set(
        jnp.asarray(params["b2"], jnp.float32).reshape(-1))

    return {"w1": w1_p, "lnp": lnp, "w2": w2_p, "b2": b2_p,
            "H": H, "H2": H2, "A": A, "Hp": Hp, "H2p": H2p, "Ap": Ap}


def bert_visual_answer_head(hidden_states, prepared, *, block_b=None, block_a=None,
                            out_dtype=jnp.float32):
    """hidden_states: (B, H) f32.  prepared: output of prepare_params()."""
    B, H = hidden_states.shape
    p = prepared
    assert H == p["H"], "hidden dim mismatch with prepared params"
    Hp, H2p, Ap = p["Hp"], p["H2p"], p["Ap"]
    H2, A = p["H2"], p["A"]
    mm_dtype = p["w1"].dtype
    mm_bytes = jnp.dtype(mm_dtype).itemsize
    out_bytes = jnp.dtype(out_dtype).itemsize

    vmem_cap = _vmem_capacity_bytes()

    # ---- batch tile: generation-aware default, adaptive to minimize padding ----
    if block_b is None:
        block_b = 512 if vmem_cap >= 100 * 1024 * 1024 else 256
    n_bt = max(1, _cdiv(B, block_b))
    TB = _round_up(_cdiv(B, n_bt), 8)
    # v7x megacore: a single-step batch grid would leave one TensorCore idle.
    if _cdiv(B, TB) == 1 and TB >= 256:
        TB = _round_up((TB + 1) // 2, 8)
    nb = _cdiv(B, TB)
    Bp = nb * TB

    # ---- answer tile: stream w2 column tiles only when the full block is big ----
    w2_budget = vmem_cap // 5
    if block_a is not None:
        TA = _pick_ta(Ap, _round_up(block_a, 256))
    elif H2p * Ap * mm_bytes <= w2_budget:
        TA = Ap
    else:
        TA = _pick_ta(Ap, max(256, (w2_budget // (2 * H2p * mm_bytes)) // 256 * 256))
    na = Ap // TA

    # ---- per-call work: only x is padded / cast (weights prepared once) ----
    x_p = jnp.zeros((Bp, Hp), mm_dtype).at[:B, :H].set(hidden_states.astype(mm_dtype))

    # ---- VMEM budget: conservative (counts default double-buffering), <= 85% cap ----
    est = 2 * Hp * H2p * mm_bytes            # w1 (worst case: double-buffered)
    est += 2 * 3 * H2p * 4                   # fused LN params
    est += 2 * H2p * TA * mm_bytes           # w2 tile
    est += 2 * TA * 4                        # b2 tile
    est += 2 * TB * Hp * mm_bytes            # x tile (double-buffered)
    est += 2 * TB * TA * out_bytes           # out tile (double-buffered)
    est += TB * H2p * mm_bytes               # hn scratch
    est += 4 * TB * H2p * 4                  # f32 intermediates inside a step
    vmem_limit = int(min(int(0.85 * vmem_cap),
                         max(32 * 1024 * 1024, int(1.25 * est))))

    kernel = functools.partial(_answer_head_kernel, h2_true=float(H2), eps=1e-12)
    cost = pl.CostEstimate(
        flops=2 * Bp * Hp * H2p + 2 * Bp * H2p * Ap,
        transcendentals=Bp * H2p,
        bytes_accessed=(Bp * Hp * mm_bytes + Hp * H2p * mm_bytes + 3 * H2p * 4
                        + H2p * Ap * mm_bytes + Ap * 4 + Bp * Ap * out_bytes))

    def _build(single_buffer):
        # w2 / b2 are grid-invariant only when the A axis is not tiled.
        w2_single = single_buffer and (na == 1)
        return pl.pallas_call(
            kernel,
            out_shape=jax.ShapeDtypeStruct((Bp, Ap), out_dtype),
            grid=(nb, na),
            in_specs=[
                pl.BlockSpec((TB, Hp), lambda i, j: (i, 0)),        # x (batch-tiled)
                _spec((Hp, H2p), lambda i, j: (0, 0), single_buffer),   # w1
                _spec((3, H2p), lambda i, j: (0, 0), single_buffer),    # b1/gamma/beta
                _spec((H2p, TA), lambda i, j: (0, j), w2_single),       # w2
                _spec((1, TA), lambda i, j: (0, j), w2_single),         # b2
            ],
            out_specs=pl.BlockSpec((TB, TA), lambda i, j: (i, j)),
            scratch_shapes=[pltpu.VMEM((TB, H2p), mm_dtype)],           # hn, reused per j
            compiler_params=pltpu.CompilerParams(
                dimension_semantics=("parallel", "arbitrary"),
                vmem_limit_bytes=vmem_limit),
            cost_estimate=cost,
        )

    args = (x_p, p["w1"], p["lnp"], p["w2"], p["b2"])
    try:
        out_p = _build(single_buffer=True)(*args)
    except Exception:
        # Fallback: installed JAX rejects Buffered(1) -> default double-buffering.
        out_p = _build(single_buffer=False)(*args)

    return out_p[:B, :A]


def init_params(key, hid_dim, num_answers):
    """Deterministic synthetic parameters (shapes match the nn.Module)."""
    k1, k2, k3, k4 = jax.random.split(key, 4)
    h2 = hid_dim * 2
    # nn.Linear weight is (out, in); store transposed as (in, out) for the kernel.
    w1 = jax.random.normal(k1, (hid_dim, h2), jnp.float32) * 0.02
    b1 = jax.random.normal(k2, (1, h2), jnp.float32) * 0.02
    gamma = jnp.ones((1, h2), jnp.float32)
    beta = jnp.zeros((1, h2), jnp.float32)
    w2 = jax.random.normal(k3, (h2, num_answers), jnp.float32) * 0.02
    b2 = jax.random.normal(k4, (1, num_answers), jnp.float32) * 0.02
    return {"w1": w1, "b1": b1, "gamma": gamma, "beta": beta, "w2": w2, "b2": b2}


def _reference(x, p, matmul_dtype=jnp.float32):
    """Pure-JAX reference (optionally mimicking the kernel's bf16 matmul operands)."""
    h = jnp.dot(x.astype(matmul_dtype), p["w1"].astype(matmul_dtype),
                preferred_element_type=jnp.float32) + p["b1"]
    h = h * 0.5 * (1.0 + jax.lax.erf(h / math.sqrt(2.0)))
    mean = jnp.mean(h, axis=-1, keepdims=True)
    var = jnp.mean((h - mean) ** 2, axis=-1, keepdims=True)
    hn = (h - mean) * jax.lax.rsqrt(var + 1e-12) * p["gamma"] + p["beta"]
    return jnp.dot(hn.astype(matmul_dtype), p["w2"].astype(matmul_dtype),
                   preferred_element_type=jnp.float32) + p["b2"]


def _check(out, x, params):
    # Tight check vs. a reference mimicking the kernel's bf16 MXU operands.
    ref_bf16 = _reference(x, params, matmul_dtype=jnp.bfloat16)
    assert jnp.allclose(out, ref_bf16, atol=2e-3, rtol=2e-3), "bf16-ref mismatch"
    # Module-semantics check vs. pure-f32 math (tolerance covers bf16 operands).
    ref_f32 = _reference(x, params, matmul_dtype=jnp.float32)
    assert jnp.allclose(out, ref_f32, atol=3e-2, rtol=3e-2), "f32-ref mismatch"


if __name__ == "__main__":
    # ---- Test 1: tiny single-tile case ----
    batch, hid_dim, num_answers = 8, 32, 16
    key = jax.random.PRNGKey(0)
    kx, kp = jax.random.split(key)
    x = jax.random.normal(kx, (batch, hid_dim), jnp.float32)
    params = init_params(kp, hid_dim, num_answers)
    prepared = prepare_params(params)                 # one-time weight pad/cast

    out = jax.block_until_ready(bert_visual_answer_head(x, prepared))
    assert out.shape == (batch, num_answers)
    _check(out, x, params)

    # ---- Test 2: multi batch tile, batch padding (B % TB handling) and a
    #              tiled answer axis (pl.when(j==0) / scratch path) ----
    batch2, hid2, ans2 = 300, 32, 300
    kx2, kp2 = jax.random.split(jax.random.PRNGKey(1))
    x2 = jax.random.normal(kx2, (batch2, hid2), jnp.float32)
    params2 = init_params(kp2, hid2, ans2)
    prepared2 = prepare_params(params2)

    out2 = jax.block_until_ready(
        bert_visual_answer_head(x2, prepared2, block_b=128, block_a=256))
    assert out2.shape == (batch2, ans2)
    _check(out2, x2, params2)

    print("KERNEL_OK")
</pallas_src>

<mosaic_0001>
module attributes {stable_mosaic.version = 11 : i64} {
  func.func @_answer_head_kernel(%arg0: i32, %arg1: i32, %arg2: memref<8x128xbf16, #tpu.memory_space<vmem>>, %arg3: memref<128x256xbf16, #tpu.memory_space<vmem>>, %arg4: memref<3x256xf32, #tpu.memory_space<vmem>>, %arg5: memref<256x256xbf16, #tpu.memory_space<vmem>>, %arg6: memref<1x256xf32, #tpu.memory_space<vmem>>, %arg7: memref<8x256xf32, #tpu.memory_space<vmem>>, %arg8: memref<8x256xbf16, #tpu.memory_space<vmem>>) attributes {dimension_semantics = [#tpu.dimension_semantics<parallel>, #tpu.dimension_semantics<arbitrary>], iteration_bounds = array<i64: 1, 1>, scalar_prefetch = 0 : i64, scratch_operands = 1 : i64, tpu.core_type = #tpu.core_type<tc>, window_params = [{transform_indices = @transform_0, window_bounds = array<i64: 8, 128>}, {pipeline_mode = #tpu.pipeline_mode<synchronous>, transform_indices = @transform_1, window_bounds = array<i64: 128, 256>}, {pipeline_mode = #tpu.pipeline_mode<synchronous>, transform_indices = @transform_2, window_bounds = array<i64: 3, 256>}, {pipeline_mode = #tpu.pipeline_mode<synchronous>, transform_indices = @transform_3, window_bounds = array<i64: 256, 256>}, {pipeline_mode = #tpu.pipeline_mode<synchronous>, transform_indices = @transform_4, window_bounds = array<i64: 1, 256>}, {transform_indices = @transform_5, window_bounds = array<i64: 8, 256>}]} {
    %c0_i32 = arith.constant 0 : i32
    %0 = arith.cmpi eq, %arg1, %c0_i32 : i32
    %1 = arith.extui %0 : i1 to i32
    %c0_i32_0 = arith.constant 0 : i32
    %2 = arith.cmpi ne, %1, %c0_i32_0 : i32
    scf.if %2 {
      %c0_8 = arith.constant 0 : index
      %c0_9 = arith.constant 0 : index
      %10 = vector.load %arg2[%c0_8, %c0_9] : memref<8x128xbf16, #tpu.memory_space<vmem>>, vector<8x128xbf16>
      %c0_10 = arith.constant 0 : index
      %c0_11 = arith.constant 0 : index
      %11 = vector.load %arg4[%c0_10, %c0_11] : memref<3x256xf32, #tpu.memory_space<vmem>>, vector<1x256xf32>
      %c1 = arith.constant 1 : index
      %c0_12 = arith.constant 0 : index
      %12 = vector.load %arg4[%c1, %c0_12] : memref<3x256xf32, #tpu.memory_space<vmem>>, vector<1x256xf32>
      %c2 = arith.constant 2 : index
      %c0_13 = arith.constant 0 : index
      %13 = vector.load %arg4[%c2, %c0_13] : memref<3x256xf32, #tpu.memory_space<vmem>>, vector<1x256xf32>
      %c0_14 = arith.constant 0 : index
      %c0_15 = arith.constant 0 : index
      %14 = vector.load %arg3[%c0_14, %c0_15] : memref<128x256xbf16, #tpu.memory_space<vmem>>, vector<128x256xbf16>
      %cst_16 = arith.constant dense<0.000000e+00> : vector<8x256xf32>
      %15 = tpu.matmul %10, %14, %cst_16 {dimension_numbers = #tpu.dot_dimension_numbers<[1], [0], [0], [1], [0, 0, 1, 1], [], []>} : vector<8x128xbf16>, vector<128x256xbf16>, vector<8x256xf32> -> vector<8x256xf32>
      %16 = vector.broadcast %11 : vector<1x256xf32> to vector<8x256xf32>
      %17 = arith.addf %15, %16 : vector<8x256xf32>
      %cst_17 = arith.constant 5.000000e-01 : f32
      %18 = vector.broadcast %cst_17 : f32 to vector<8x256xf32>
      %19 = arith.mulf %17, %18 : vector<8x256xf32>
      %cst_18 = arith.constant 0.707106769 : f32
      %20 = vector.broadcast %cst_18 : f32 to vector<8x256xf32>
      %21 = arith.mulf %17, %20 : vector<8x256xf32>
      %22 = math.erf %21 : vector<8x256xf32>
      %cst_19 = arith.constant 1.000000e+00 : f32
      %23 = vector.broadcast %cst_19 : f32 to vector<8x256xf32>
      %24 = arith.addf %23, %22 : vector<8x256xf32>
      %25 = arith.mulf %19, %24 : vector<8x256xf32>
      %cst_20 = arith.constant dense<0.000000e+00> : vector<8xf32>
      %26 = vector.multi_reduction <add>, %25, %cst_20 [1] : vector<8x256xf32> to vector<8xf32>
      %27 = vector.shape_cast %26 : vector<8xf32> to vector<8x1xf32>
      %28 = arith.mulf %25, %25 : vector<8x256xf32>
      %cst_21 = arith.constant dense<0.000000e+00> : vector<8xf32>
      %29 = vector.multi_reduction <add>, %28, %cst_21 [1] : vector<8x256xf32> to vector<8xf32>
      %30 = vector.shape_cast %29 : vector<8xf32> to vector<8x1xf32>
      %cst_22 = arith.constant 1.562500e-02 : f32
      %31 = vector.broadcast %cst_22 : f32 to vector<8x1xf32>
      %32 = arith.mulf %27, %31 : vector<8x1xf32>
      %cst_23 = arith.constant 1.562500e-02 : f32
      %33 = vector.broadcast %cst_23 : f32 to vector<8x1xf32>
      %34 = arith.mulf %30, %33 : vector<8x1xf32>
      %35 = arith.mulf %32, %32 : vector<8x1xf32>
      %36 = arith.subf %34, %35 : vector<8x1xf32>
      %cst_24 = arith.constant 0.000000e+00 : f32
      %37 = vector.broadcast %cst_24 : f32 to vector<8x1xf32>
      %38 = arith.maximumf %36, %37 : vector<8x1xf32>
      %cst_25 = arith.constant 9.99999996E-13 : f32
      %39 = vector.broadcast %cst_25 : f32 to vector<8x1xf32>
      %40 = arith.addf %38, %39 : vector<8x1xf32>
      %41 = math.rsqrt %40 : vector<8x1xf32>
      %42 = vector.broadcast %32 : vector<8x1xf32> to vector<8x256xf32>
      %43 = arith.subf %25, %42 : vector<8x256xf32>
      %44 = vector.broadcast %41 : vector<8x1xf32> to vector<8x256xf32>
      %45 = arith.mulf %43, %44 : vector<8x256xf32>
      %46 = vector.broadcast %12 : vector<1x256xf32> to vector<8x256xf32>
      %47 = arith.mulf %45, %46 : vector<8x256xf32>
      %48 = vector.broadcast %13 : vector<1x256xf32> to vector<8x256xf32>
      %49 = arith.addf %47, %48 : vector<8x256xf32>
      %50 = arith.truncf %49 : vector<8x256xf32> to vector<8x256xbf16>
      %c0_26 = arith.constant 0 : index
      %c0_27 = arith.constant 0 : index
      %51 = vector.load %arg8[%c0_26, %c0_27] : memref<8x256xbf16, #tpu.memory_space<vmem>>, vector<8x256xbf16>
      tpu.vector_store %arg8[%c0_26, %c0_27], %50 {strides = array<i32>} : memref<8x256xbf16, #tpu.memory_space<vmem>>, vector<8x256xbf16>,
    } else {
    }
    %c0 = arith.constant 0 : index
    %c0_1 = arith.constant 0 : index
    %3 = vector.load %arg8[%c0, %c0_1] : memref<8x256xbf16, #tpu.memory_space<vmem>>, vector<8x256xbf16>
    %c0_2 = arith.constant 0 : index
    %c0_3 = arith.constant 0 : index
    %4 = vector.load %arg5[%c0_2, %c0_3] : memref<256x256xbf16, #tpu.memory_space<vmem>>, vector<256x256xbf16>
    %cst = arith.constant dense<0.000000e+00> : vector<8x256xf32>
    %5 = tpu.matmul %3, %4, %cst {dimension_numbers = #tpu.dot_dimension_numbers<[1], [0], [0], [1], [0, 0, 1, 1], [], []>} : vector<8x256xbf16>, vector<256x256xbf16>, vector<8x256xf32> -> vector<8x256xf32>
    %c0_4 = arith.constant 0 : index
    %c0_5 = arith.constant 0 : index
    %6 = vector.load %arg6[%c0_4, %c0_5] : memref<1x256xf32, #tpu.memory_space<vmem>>, vector<1x256xf32>
    %7 = vector.broadcast %6 : vector<1x256xf32> to vector<8x256xf32>
    %8 = arith.addf %5, %7 : vector<8x256xf32>
    %c0_6 = arith.constant 0 : index
    %c0_7 = arith.constant 0 : index
    %9 = vector.load %arg7[%c0_6, %c0_7] : memref<8x256xf32, #tpu.memory_space<vmem>>, vector<8x256xf32>
    tpu.vector_store %arg7[%c0_6, %c0_7], %8 {strides = array<i32>} : memref<8x256xf32, #tpu.memory_space<vmem>>, vector<8x256xf32>,
    return
  }
  func.func @transform_0(%arg0: i32, %arg1: i32) -> (i32, i32) {
    %c0_i32 = arith.constant 0 : i32
    %c0_i32_0 = arith.constant 0 : i32
    return %arg0, %c0_i32 : i32, i32
  }
  func.func @transform_1(%arg0: i32, %arg1: i32) -> (i32, i32) {
    %c0_i32 = arith.constant 0 : i32
    %c0_i32_0 = arith.constant 0 : i32
    %c0_i32_1 = arith.constant 0 : i32
    return %c0_i32, %c0_i32_0 : i32, i32
  }
  func.func @transform_2(%arg0: i32, %arg1: i32) -> (i32, i32) {
    %c0_i32 = arith.constant 0 : i32
    %c0_i32_0 = arith.constant 0 : i32
    %c0_i32_1 = arith.constant 0 : i32
    return %c0_i32, %c0_i32_0 : i32, i32
  }
  func.func @transform_3(%arg0: i32, %arg1: i32) -> (i32, i32) {
    %c0_i32 = arith.constant 0 : i32
    %c0_i32_0 = arith.constant 0 : i32
    return %c0_i32, %arg1 : i32, i32
  }
  func.func @transform_4(%arg0: i32, %arg1: i32) -> (i32, i32) {
    %c0_i32 = arith.constant 0 : i32
    %c0_i32_0 = arith.constant 0 : i32
    return %c0_i32, %arg1 : i32, i32
  }
  func.func @transform_5(%arg0: i32, %arg1: i32) -> (i32, i32) {
    %c0_i32 = arith.constant 0 : i32
    return %arg0, %arg1 : i32, i32
  }
}

module attributes {stable_mosaic.version = 11 : i64} {
  func.func @_answer_head_kernel(%arg0: i32, %arg1: i32, %arg2: memref<8x128xbf16, #tpu.memory_space<vmem>>, %arg3: memref<128x256xbf16, #tpu.memory_space<vmem>>, %arg4: memref<3x256xf32, #tpu.memory_space<vmem>>, %arg5: memref<256x256xbf16, #tpu.memory_space<vmem>>, %arg6: memref<1x256xf32, #tpu.memory_space<vmem>>, %arg7: memref<8x256xf32, #tpu.memory_space<vmem>>, %arg8: memref<8x256xbf16, #tpu.memory_space<vmem>>) attributes {dimension_semantics = [#tpu.dimension_semantics<parallel>, #tpu.dimension_semantics<arbitrary>], iteration_bounds = array<i64: 1, 1>, scalar_prefetch = 0 : i64, scratch_operands = 1 : i64, tpu.core_type = #tpu.core_type<tc>, window_params = [{transform_indices = @transform_0, window_bounds = array<i64: 8, 128>}, {pipeline_mode = #tpu.pipeline_mode<synchronous>, transform_indices = @transform_1, window_bounds = array<i64: 128, 256>}, {pipeline_mode = #tpu.pipeline_mode<synchronous>, transform_indices = @transform_2, window_bounds = array<i64: 3, 256>}, {transform_indices = @transform_3, window_bounds = array<i64: 256, 256>}, {transform_indices = @transform_4, window_bounds = array<i64: 1, 256>}, {transform_indices = @transform_5, window_bounds = array<i64: 8, 256>}]} {
    %c0_i32 = arith.constant 0 : i32
    %0 = arith.cmpi eq, %arg1, %c0_i32 : i32
    %1 = arith.extui %0 : i1 to i32
    %c0_i32_0 = arith.constant 0 : i32
    %2 = arith.cmpi ne, %1, %c0_i32_0 : i32
    scf.if %2 {
      %c0_8 = arith.constant 0 : index
      %c0_9 = arith.constant 0 : index
      %10 = vector.load %arg2[%c0_8, %c0_9] : memref<8x128xbf16, #tpu.memory_space<vmem>>, vector<8x128xbf16>
      %c0_10 = arith.constant 0 : index
      %c0_11 = arith.constant 0 : index
      %11 = vector.load %arg4[%c0_10, %c0_11] : memref<3x256xf32, #tpu.memory_space<vmem>>, vector<1x256xf32>
      %c1 = arith.constant 1 : index
      %c0_12 = arith.constant 0 : index
      %12 = vector.load %arg4[%c1, %c0_12] : memref<3x256xf32, #tpu.memory_space<vmem>>, vector<1x256xf32>
      %c2 = arith.constant 2 : index
      %c0_13 = arith.constant 0 : index
      %13 = vector.load %arg4[%c2, %c0_13] : memref<3x256xf32, #tpu.memory_space<vmem>>, vector<1x256xf32>
      %c0_14 = arith.constant 0 : index
      %c0_15 = arith.constant 0 : index
      %14 = vector.load %arg3[%c0_14, %c0_15] : memref<128x256xbf16, #tpu.memory_space<vmem>>, vector<128x256xbf16>
      %cst_16 = arith.constant dense<0.000000e+00> : vector<8x256xf32>
      %15 = tpu.matmul %10, %14, %cst_16 {dimension_numbers = #tpu.dot_dimension_numbers<[1], [0], [0], [1], [0, 0, 1, 1], [], []>} : vector<8x128xbf16>, vector<128x256xbf16>, vector<8x256xf32> -> vector<8x256xf32>
      %16 = vector.broadcast %11 : vector<1x256xf32> to vector<8x256xf32>
      %17 = arith.addf %15, %16 : vector<8x256xf32>
      %cst_17 = arith.constant 5.000000e-01 : f32
      %18 = vector.broadcast %cst_17 : f32 to vector<8x256xf32>
      %19 = arith.mulf %17, %18 : vector<8x256xf32>
      %cst_18 = arith.constant 0.707106769 : f32
      %20 = vector.broadcast %cst_18 : f32 to vector<8x256xf32>
      %21 = arith.mulf %17, %20 : vector<8x256xf32>
      %22 = math.erf %21 : vector<8x256xf32>
      %cst_19 = arith.constant 1.000000e+00 : f32
      %23 = vector.broadcast %cst_19 : f32 to vector<8x256xf32>
      %24 = arith.addf %23, %22 : vector<8x256xf32>
      %25 = arith.mulf %19, %24 : vector<8x256xf32>
      %cst_20 = arith.constant dense<0.000000e+00> : vector<8xf32>
      %26 = vector.multi_reduction <add>, %25, %cst_20 [1] : vector<8x256xf32> to vector<8xf32>
      %27 = vector.shape_cast %26 : vector<8xf32> to vector<8x1xf32>
      %28 = arith.mulf %25, %25 : vector<8x256xf32>
      %cst_21 = arith.constant dense<0.000000e+00> : vector<8xf32>
      %29 = vector.multi_reduction <add>, %28, %cst_21 [1] : vector<8x256xf32> to vector<8xf32>
      %30 = vector.shape_cast %29 : vector<8xf32> to vector<8x1xf32>
      %cst_22 = arith.constant 1.562500e-02 : f32
      %31 = vector.broadcast %cst_22 : f32 to vector<8x1xf32>
      %32 = arith.mulf %27, %31 : vector<8x1xf32>
      %cst_23 = arith.constant 1.562500e-02 : f32
      %33 = vector.broadcast %cst_23 : f32 to vector<8x1xf32>
      %34 = arith.mulf %30, %33 : vector<8x1xf32>
      %35 = arith.mulf %32, %32 : vector<8x1xf32>
      %36 = arith.subf %34, %35 : vector<8x1xf32>
      %cst_24 = arith.constant 0.000000e+00 : f32
      %37 = vector.broadcast %cst_24 : f32 to vector<8x1xf32>
      %38 = arith.maximumf %36, %37 : vector<8x1xf32>
      %cst_25 = arith.constant 9.99999996E-13 : f32
      %39 = vector.broadcast %cst_25 : f32 to vector<8x1xf32>
      %40 = arith.addf %38, %39 : vector<8x1xf32>
      %41 = math.rsqrt %40 : vector<8x1xf32>
      %42 = vector.broadcast %32 : vector<8x1xf32> to vector<8x256xf32>
      %43 = arith.subf %25, %42 : vector<8x256xf32>
      %44 = vector.broadcast %41 : vector<8x1xf32> to vector<8x256xf32>
      %45 = arith.mulf %43, %44 : vector<8x256xf32>
      %46 = vector.broadcast %12 : vector<1x256xf32> to vector<8x256xf32>
      %47 = arith.mulf %45, %46 : vector<8x256xf32>
      %48 = vector.broadcast %13 : vector<1x256xf32> to vector<8x256xf32>
      %49 = arith.addf %47, %48 : vector<8x256xf32>
      %50 = arith.truncf %49 : vector<8x256xf32> to vector<8x256xbf16>
      %c0_26 = arith.constant 0 : index
      %c0_27 = arith.constant 0 : index
      %51 = vector.load %arg8[%c0_26, %c0_27] : memref<8x256xbf16, #tpu.memory_space<vmem>>, vector<8x256xbf16>
      tpu.vector_store %arg8[%c0_26, %c0_27], %50 {strides = array<i32>} : memref<8x256xbf16, #tpu.memory_space<vmem>>, vector<8x256xbf16>,
    } else {
    }
    %c0 = arith.constant 0 : index
    %c0_1 = arith.constant 0 : index
    %3 = vector.load %arg8[%c0, %c0_1] : memref<8x256xbf16, #tpu.memory_space<vmem>>, vector<8x256xbf16>
    %c0_2 = arith.constant 0 : index
    %c0_3 = arith.constant 0 : index
    %4 = vector.load %arg5[%c0_2, %c0_3] : memref<256x256xbf16, #tpu.memory_space<vmem>>, vector<256x256xbf16>
    %cst = arith.constant dense<0.000000e+00> : vector<8x256xf32>
    %5 = tpu.matmul %3, %4, %cst {dimension_numbers = #tpu.dot_dimension_numbers<[1], [0], [0], [1], [0, 0, 1, 1], [], []>} : vector<8x256xbf16>, vector<256x256xbf16>, vector<8x256xf32> -> vector<8x256xf32>
    %c0_4 = arith.constant 0 : index
    %c0_5 = arith.constant 0 : index
    %6 = vector.load %arg6[%c0_4, %c0_5] : memref<1x256xf32, #tpu.memory_space<vmem>>, vector<1x256xf32>
    %7 = vector.broadcast %6 : vector<1x256xf32> to vector<8x256xf32>
    %8 = arith.addf %5, %7 : vector<8x256xf32>
    %c0_6 = arith.constant 0 : index
    %c0_7 = arith.constant 0 : index
    %9 = vector.load %arg7[%c0_6, %c0_7] : memref<8x256xf32, #tpu.memory_space<vmem>>, vector<8x256xf32>
    tpu.vector_store %arg7[%c0_6, %c0_7], %8 {strides = array<i32>} : memref<8x256xf32, #tpu.memory_space<vmem>>, vector<8x256xf32>,
    return
  }
  func.func @transform_0(%arg0: i32, %arg1: i32) -> (i32, i32) {
    %c0_i32 = arith.constant 0 : i32
    %c0_i32_0 = arith.constant 0 : i32
    return %arg0, %c0_i32 : i32, i32
  }
  func.func @transform_1(%arg0: i32, %arg1: i32) -> (i32, i32) {
    %c0_i32 = arith.constant 0 : i32
    %c0_i32_0 = arith.constant 0 : i32
    %c0_i32_1 = arith.constant 0 : i32
    return %c0_i32, %c0_i32_0 : i32, i32
  }
  func.func @transform_2(%arg0: i32, %arg1: i32) -> (i32, i32) {
    %c0_i32 = arith.constant 0 : i32
    %c0_i32_0 = arith.constant 0 : i32
    %c0_i32_1 = arith.constant 0 : i32
    return %c0_i32, %c0_i32_0 : i32, i32
  }
  func.func @transform_3(%arg0: i32, %arg1: i32) -> (i32, i32) {
    %c0_i32 = arith.constant 0 : i32
    %c0_i32_0 = arith.constant 0 : i32
    return %c0_i32, %arg1 : i32, i32
  }
  func.func @transform_4(%arg0: i32, %arg1: i32) -> (i32, i32) {
    %c0_i32 = arith.constant 0 : i32
    %c0_i32_0 = arith.constant 0 : i32
    return %c0_i32, %arg1 : i32, i32
  }
  func.func @transform_5(%arg0: i32, %arg1: i32) -> (i32, i32) {
    %c0_i32 = arith.constant 0 : i32
    return %arg0, %arg1 : i32, i32
  }
}

</mosaic_0001>

<llo_original>
// kernel: tpu_custom_call.1
$region0: #{tpu_custom_call.1}
  #allocation0 [shape = 'u32[]', space=smem, size = 0x4, offset = 0x4, fixed_abs, tag = 'smem constant byte address 0x4 - core index']
  #allocation1 [shape = 'u32[144,128]{1,0:T(1,128)}', space=vmem, size = 0x12000, scoped, tag = 'internal scratch']
  #allocation2 [shape = 'bf16[8,256]{1,0:T(8,128)(2,1)}', space=vmem, size = 0x1000, scoped, tag = 'scratch operand']
  %s0 = inlined_call_operand.hbm [shape: bf16[8,128], index: 0, kind: input, shape index: {}]
  %s1 = inlined_call_operand.hbm [shape: bf16[128,256], index: 1, kind: input, shape index: {}]
  %s2 = inlined_call_operand.hbm [shape: f32[3,256], index: 2, kind: input, shape index: {}]
  %s3 = inlined_call_operand.hbm [shape: bf16[256,256], index: 3, kind: input, shape index: {}]
  %s4 = inlined_call_operand.vmem [shape: f32[1,256], index: 4, kind: input, shape index: {}]
  %s5 = inlined_call_operand.hbm [shape: f32[8,256], index: 5, kind: output, shape index: {}]
  %s6 = sld [smem:[#allocation0]]
  $region50: #{tpu_custom_call.1} parent=0
    _
  %s8 = ssub.s32 1, %s6
  %s9 = scalar_select 0, %s8, %s6
  $region1: #{tpu_custom_call.1} parent=0
    #allocation3 [shape = 'u8[2048]{0}', space=vmem, size = 0x800, scoped, tag = 'input window, operand 0, single buffered']
    #allocation4 [shape = 's32[1]{0}', space=sflag, size = 0x4, scoped, tag = 'scoped memory for tpu_custom_call.1']
    #allocation5 [shape = 's32[1]{0}', space=sflag, size = 0x4, scoped, tag = 'scoped memory for tpu_custom_call.1']
    #allocation6 [shape = 'u8[65536]{0}', space=vmem, size = 0x10000, scoped, tag = 'input window, operand 1, single buffered']
    #allocation7 [shape = 's32[1]{0}', space=sflag, size = 0x4, scoped, tag = 'scoped memory for tpu_custom_call.1']
    #allocation8 [shape = 'u8[4096]{0}', space=vmem, size = 0x1000, scoped, tag = 'input window, operand 2, single buffered']
    #allocation9 [shape = 'u8[131072]{0}', space=vmem, size = 0x20000, scoped, tag = 'input window, operand 3, single buffered']
    #allocation10 [shape = 's32[1]{0}', space=sflag, size = 0x4, scoped, tag = 'scoped memory for tpu_custom_call.1']
    #allocation11 [shape = 'u8[8192]{0}', space=vmem, size = 0x2000, scoped, tag = 'output window, operand 0, single buffered']
    %10 = vsyncpa [#allocation4], 0
    %11 = vsyncpa [#allocation7], 0
    %12 = vsyncpa [#allocation10], 0
    %13 = vsyncpa [#allocation5], 0
    // Predicated region
    $region2: #{tpu_custom_call.1} parent=1 // pred_check
      _
    $region3: #{tpu_custom_call.1} parent=1 // pred_check_branch
      %15 = sbr.rel (0) target = $region5
    $region4: #{tpu_custom_call.1} parent=1 // pred_region
      %s17 = ssub.s32 64, 64
      %18 = vsyncadd [#allocation4], %s17
      %s20 = sshll.u32 [#allocation3], 4
      %s21 = int_to_ptr.vmem [resolvable:$true] %s20
      %23 = dma.hbm_to_vmem [thread:$0]  %s0, 64, %s21, [#allocation4]
    $region5: #{tpu_custom_call.1} parent=1 // pred_fallthru
      _
    // Predicated region
    $region6: #{tpu_custom_call.1} parent=1 // pred_check
      _
    $region7: #{tpu_custom_call.1} parent=1 // pred_check_branch
      %25 = sbr.rel (0) target = $region9
    $region8: #{tpu_custom_call.1} parent=1 // pred_region
      %s27 = ssub.s32 2048, 2048
      %28 = vsyncadd [#allocation7], %s27
      %s29 = sshll.u32 [#allocation6], 4
      %s30 = int_to_ptr.vmem [resolvable:$true] %s29
      %35 = dma.hbm_to_vmem [thread:$0]  %s1, 2048, %s30, [#allocation7], 128, 128, 8
    $region9: #{tpu_custom_call.1} parent=1 // pred_fallthru
      _
    // Predicated region
    $region10: #{tpu_custom_call.1} parent=1 // pred_check
      _
    $region11: #{tpu_custom_call.1} parent=1 // pred_check_branch
      %37 = sbr.rel (0) target = $region13
    $region12: #{tpu_custom_call.1} parent=1 // pred_region
      %s39 = ssub.s32 128, 128
      %40 = vsyncadd [#allocation7], %s39
      %s42 = sshll.u32 [#allocation8], 4
      %s43 = int_to_ptr.vmem [resolvable:$true] %s42
      %45 = dma.hbm_to_vmem [thread:$0]  %s2, 128, %s43, [#allocation7]
    $region13: #{tpu_custom_call.1} parent=1 // pred_fallthru
      _
    // Predicated region
    $region14: #{tpu_custom_call.1} parent=1 // pred_check
      _
    $region15: #{tpu_custom_call.1} parent=1 // pred_check_branch
      %47 = sbr.rel (0) target = $region17
    $region16: #{tpu_custom_call.1} parent=1 // pred_region
      %s49 = ssub.s32 4096, 4096
      %50 = vsyncadd [#allocation10], %s49
      %s51 = sshll.u32 [#allocation9], 4
      %s52 = int_to_ptr.vmem [resolvable:$true] %s51
      %57 = dma.hbm_to_vmem [thread:$0]  %s3, 4096, %s52, [#allocation10], 128, 128, 8
    $region17: #{tpu_custom_call.1} parent=1 // pred_fallthru
      _
    // Predicated region
    $region18: #{tpu_custom_call.1} parent=1 // pred_check
      _
    $region19: #{tpu_custom_call.1} parent=1 // pred_check_branch
      %59 = sbr.rel (0) target = $region21
    $region20: #{tpu_custom_call.1} parent=1 // pred_region
      _
    $region21: #{tpu_custom_call.1} parent=1 // pred_fallthru
      _
    // Predicated region
    $region22: #{tpu_custom_call.1} parent=1 // pred_check
      _
    $region23: #{tpu_custom_call.1} parent=1 // pred_check_branch
      %61 = sbr.rel (0) target = $region25
    $region24: #{tpu_custom_call.1} parent=1 // pred_region
      %62 = dma.done [#allocation4], 64
    $region25: #{tpu_custom_call.1} parent=1 // pred_fallthru
      _
    // Predicated region
    $region26: #{tpu_custom_call.1} parent=1 // pred_check
      _
    $region27: #{tpu_custom_call.1} parent=1 // pred_check_branch
      %64 = sbr.rel (0) target = $region29
    $region28: #{tpu_custom_call.1} parent=1 // pred_region
      %65 = dma.done [#allocation7], 2048
    $region29: #{tpu_custom_call.1} parent=1 // pred_fallthru
      _
    // Predicated region
    $region30: #{tpu_custom_call.1} parent=1 // pred_check
      _
    $region31: #{tpu_custom_call.1} parent=1 // pred_check_branch
      %67 = sbr.rel (0) target = $region33
    $region32: #{tpu_custom_call.1} parent=1 // pred_region
      %68 = dma.done [#allocation7], 128
    $region33: #{tpu_custom_call.1} parent=1 // pred_fallthru
      _
    // Predicated region
    $region34: #{tpu_custom_call.1} parent=1 // pred_check
      _
    $region35: #{tpu_custom_call.1} parent=1 // pred_check_branch
      %70 = sbr.rel (0) target = $region37
    $region36: #{tpu_custom_call.1} parent=1 // pred_region
      %71 = dma.done [#allocation10], 4096
    $region37: #{tpu_custom_call.1} parent=1 // pred_fallthru
      _
    %p73 = scmp.eq.s32.totalorder 0, 0
    // Predicated region
    $region38: #{tpu_custom_call.1} parent=1 // pred_check
      %p74 = pneg %p73
    $region39: #{tpu_custom_call.1} parent=1 // pred_check_branch
      %76 = sbr.rel (%p74) target = $region41
    $region40: #{tpu_custom_call.1} parent=1 // pred_region
      %v77 = vld [vmem:[#allocation3] sm:$0xf]
      %v78 = vld [vmem:[#allocation8] ss:$4 sm:$0x3]
      %s79 = scalar_lea.vmem [#allocation8], 1
      %v80 = vld [vmem:[%s79] ss:$4 sm:$0x3]
      %s81 = scalar_lea.vmem [#allocation8], 2
      %v82 = vld [vmem:[%s81] ss:$4 sm:$0x3]
      %v83 = vld [vmem:[#allocation6] sm:$0xff]
      %v84 = vld [vmem:[#allocation6 + $0x8] sm:$0xff]
      %v85 = vld [vmem:[#allocation6 + $0x10] sm:$0xff]
      %v86 = vld [vmem:[#allocation6 + $0x18] sm:$0xff]
      %v87 = vld [vmem:[#allocation6 + $0x20] sm:$0xff]
      %v88 = vld [vmem:[#allocation6 + $0x28] sm:$0xff]
      %v89 = vld [vmem:[#allocation6 + $0x30] sm:$0xff]
      %v90 = vld [vmem:[#allocation6 + $0x38] sm:$0xff]
      %v91 = vld [vmem:[#allocation6 + $0x40] sm:$0xff]
      %v92 = vld [vmem:[#allocation6 + $0x48] sm:$0xff]
      %v93 = vld [vmem:[#allocation6 + $0x50] sm:$0xff]
      %v94 = vld [vmem:[#allocation6 + $0x58] sm:$0xff]
      %v95 = vld [vmem:[#allocation6 + $0x60] sm:$0xff]
      %v96 = vld [vmem:[#allocation6 + $0x68] sm:$0xff]
      %v97 = vld [vmem:[#allocation6 + $0x70] sm:$0xff]
      %v98 = vld [vmem:[#allocation6 + $0x78] sm:$0xff]
      %v100 = vlaneseq
      %v101 = vshrl.u32 %v100, 7
      %v102 = vsub.s32 0, %v101
      %v103 = vrot.slane %v78, %v102
      %v104 = vlaneseq
      %v105 = vshrl.u32 %v104, 7
      %v106 = vsub.s32 1, %v105
      %v107 = vrot.slane %v78, %v106
      %v126 = vunpack.c.l.b16 %v83
      %v127 = vunpack.c.h.b16 %v83
      %v128 = vunpack.c.l.b16 %v84
      %v129 = vunpack.c.h.b16 %v84
      %v130 = vunpack.c.l.b16 %v85
      %v131 = vunpack.c.h.b16 %v85
      %v132 = vunpack.c.l.b16 %v86
      %v133 = vunpack.c.h.b16 %v86
      %v134 = vunpack.c.l.b16 %v87
      %v135 = vunpack.c.h.b16 %v87
      %v136 = vunpack.c.l.b16 %v88
      %v137 = vunpack.c.h.b16 %v88
      %v138 = vunpack.c.l.b16 %v89
      %v139 = vunpack.c.h.b16 %v89
      %v140 = vunpack.c.l.b16 %v90
      %v141 = vunpack.c.h.b16 %v90
      %v142 = vunpack.c.l.b16 %v91
      %v143 = vunpack.c.h.b16 %v91
      %v144 = vunpack.c.l.b16 %v92
      %v145 = vunpack.c.h.b16 %v92
      %v146 = vunpack.c.l.b16 %v93
      %v147 = vunpack.c.h.b16 %v93
      %v148 = vunpack.c.l.b16 %v94
      %v149 = vunpack.c.h.b16 %v94
      %v150 = vunpack.c.l.b16 %v95
      %v151 = vunpack.c.h.b16 %v95
      %v152 = vunpack.c.l.b16 %v96
      %v153 = vunpack.c.h.b16 %v96
      %v154 = vunpack.c.l.b16 %v97
      %v155 = vunpack.c.h.b16 %v97
      %v156 = vunpack.c.l.b16 %v98
      %v157 = vunpack.c.h.b16 %v98
      %v158 = vpack.c.b16 %v128, %v126
      %v159 = vpack.c.b16 %v129, %v127
      %v160 = vpack.c.b16 %v132, %v130
      %v161 = vpack.c.b16 %v133, %v131
      %v162 = vpack.c.b16 %v136, %v134
      %v163 = vpack.c.b16 %v137, %v135
      %v164 = vpack.c.b16 %v140, %v138
      %v165 = vpack.c.b16 %v141, %v139
      %v166 = vpack.c.b16 %v144, %v142
      %v167 = vpack.c.b16 %v145, %v143
      %v168 = vpack.c.b16 %v148, %v146
      %v169 = vpack.c.b16 %v149, %v147
      %v170 = vpack.c.b16 %v152, %v150
      %v171 = vpack.c.b16 %v153, %v151
      %v172 = vpack.c.b16 %v156, %v154
      %v173 = vpack.c.b16 %v157, %v155
      %190 = vmatprep.subr.bf16.mxu0 %v159
      %191 = vmatpush1.bf16.msra.mxu0 %v158
      %192 = vmatprep.subr.bf16.mxu0 %v161
      %193 = vmatpush1.bf16.msra.mxu0 %v160
      %194 = vmatprep.subr.bf16.mxu0 %v163
      %195 = vmatpush1.bf16.msra.mxu0 %v162
      %196 = vmatprep.subr.bf16.mxu0 %v165
      %197 = vmatpush1.bf16.msra.mxu0 %v164
      %198 = vmatprep.subr.bf16.mxu0 %v167
      %199 = vmatpush1.bf16.msra.mxu0 %v166
      %200 = vmatprep.subr.bf16.mxu0 %v169
      %201 = vmatpush1.bf16.msra.mxu0 %v168
      %202 = vmatprep.subr.bf16.mxu0 %v171
      %203 = vmatpush1.bf16.msra.mxu0 %v170
      %204 = vmatprep.subr.bf16.mxu0 %v173
      %205 = vmatpush1.bf16.msra.mxu0 %v172
      %206 = vmatprep.subr.bf16.mxu0 0
      %207 = vmatpush1.bf16.msra.mxu0 0
      %208 = vmatprep.subr.bf16.mxu0 0
      %209 = vmatpush1.bf16.msra.mxu0 0
      %210 = vmatprep.subr.bf16.mxu0 0
      %211 = vmatpush1.bf16.msra.mxu0 0
      %212 = vmatprep.subr.bf16.mxu0 0
      %213 = vmatpush1.bf16.msra.mxu0 0
      %214 = vmatprep.subr.bf16.mxu0 0
      %215 = vmatpush1.bf16.msra.mxu0 0
      %216 = vmatprep.subr.bf16.mxu0 0
      %217 = vmatpush1.bf16.msra.mxu0 0
      %218 = vmatprep.subr.bf16.mxu0 0
      %219 = vmatpush1.bf16.msra.mxu0 0
      %220 = vmatprep.subr.bf16.mxu0 0
      %221 = vmatpush1.bf16.msra.mxu0 0
      %222 = vmatprep.mubr.bf16.mxu0 0
      %223 = vmatmul.mubr.bf16.gmra.mrb[0].mxu0 %v77
      %v224 = vpop.f32.mrb[0].mxu0
      %v225 = vadd.f32 %v103, %v224
      %v226 = vpop.f32.mrb[0].mxu0
      %v227 = vadd.f32 %v107, %v226
      %v228 = vpop.f32.mrb[0].mxu0
      %v229 = vpop.f32.mrb[0].mxu0
      %230 = vdwg.mxu0
      %v231 = vmul.f32 %v225, 0.5
      %v232 = vmul.f32 %v227, 0.5
      %v233 = vmul.f32 %v225, 0.70710677
      %v234 = vmul.f32 %v227, 0.70710677
      %v235 = verf.f32.pop %v233
      %v236 = verf.f32.pop %v234
      %v237 = vadd.f32 %v235, 1.0
      %v238 = vadd.f32 %v236, 1.0
      %v239 = vmul.f32 %v231, %v237
      %v240 = vmul.f32 %v232, %v238
      %v241 = vadd.f32 %v239, %v240
      %242 = vadd.xlane.f32.xlu0 %v241
      %v243 = vpop.xlane.xlu0 %242
      %v244 = vmul.f32 %v239, %v239
      %v245 = vmul.f32 %v240, %v240
      %v246 = vadd.f32 %v244, %v245
      %247 = vadd.xlane.f32.xlu0 %v246
      %v248 = vpop.xlane.xlu0 %247
      %v249 = vmul.f32 %v243, 0.015625
      %v250 = vmul.f32 %v248, 0.015625
      %v251 = vmul.f32 %v249, %v249
      %v252 = vsub.f32 %v250, %v251
      %v253 = vmax.f32 %v252, 0.0
      %v254 = vadd.f32 %v253, 1e-12
      %v255 = vrsqrt.pop %v254
      %v256 = vsub.f32 %v239, %v249
      %v257 = vsub.f32 %v240, %v249
      %v258 = vmul.f32 %v256, %v255
      %v259 = vmul.f32 %v257, %v255
      %v261 = vlaneseq
      %v262 = vshrl.u32 %v261, 7
      %v263 = vsub.s32 0, %v262
      %v264 = vrot.slane %v80, %v263
      %v265 = vlaneseq
      %v266 = vshrl.u32 %v265, 7
      %v267 = vsub.s32 1, %v266
      %v268 = vrot.slane %v80, %v267
      %v271 = vmul.f32 %v258, %v264
      %v272 = vmul.f32 %v259, %v268
      %v274 = vlaneseq
      %v275 = vshrl.u32 %v274, 7
      %v276 = vsub.s32 0, %v275
      %v277 = vrot.slane %v82, %v276
      %v278 = vlaneseq
      %v279 = vshrl.u32 %v278, 7
      %v280 = vsub.s32 1, %v279
      %v281 = vrot.slane %v82, %v280
      %v284 = vadd.f32 %v271, %v277
      %v285 = vadd.f32 %v272, %v281
      %v286 = vpack.c.bf16 %v284, %v284
      %v287 = vpack.c.bf16 %v285, %v285
      %v290 = vunpack.c.l.b16 %v286
      %v291 = vunpack.c.l.b16 %v287
      %v292 = vpack.c.b16 %v291, %v290
      %294 = vst [vmem:[#allocation2] sm:$0xff] %v292
    $region41: #{tpu_custom_call.1} parent=1 // pred_fallthru
      _
    %v295 = vld [vmem:[#allocation2] sm:$0xff]
    %v296 = vld [vmem:[#allocation9] sm:$0xff]
    %v297 = vld [vmem:[#allocation9 + $0x8] sm:$0xff]
    %v298 = vld [vmem:[#allocation9 + $0x10] sm:$0xff]
    %v299 = vld [vmem:[#allocation9 + $0x18] sm:$0xff]
    %v300 = vld [vmem:[#allocation9 + $0x20] sm:$0xff]
    %v301 = vld [vmem:[#allocation9 + $0x28] sm:$0xff]
    %v302 = vld [vmem:[#allocation9 + $0x30] sm:$0xff]
    %v303 = vld [vmem:[#allocation9 + $0x38] sm:$0xff]
    %v304 = vld [vmem:[#allocation9 + $0x40] sm:$0xff]
    %v305 = vld [vmem:[#allocation9 + $0x48] sm:$0xff]
    %v306 = vld [vmem:[#allocation9 + $0x50] sm:$0xff]
    %v307 = vld [vmem:[#allocation9 + $0x58] sm:$0xff]
    %v308 = vld [vmem:[#allocation9 + $0x60] sm:$0xff]
    %v309 = vld [vmem:[#allocation9 + $0x68] sm:$0xff]
    %v310 = vld [vmem:[#allocation9 + $0x70] sm:$0xff]
    %v311 = vld [vmem:[#allocation9 + $0x78] sm:$0xff]
    %v312 = vld [vmem:[#allocation9 + $0x80] sm:$0xff]
    %v313 = vld [vmem:[#allocation9 + $0x88] sm:$0xff]
    %v314 = vld [vmem:[#allocation9 + $0x90] sm:$0xff]
    %v315 = vld [vmem:[#allocation9 + $0x98] sm:$0xff]
    %v316 = vld [vmem:[#allocation9 + $0xa0] sm:$0xff]
    %v317 = vld [vmem:[#allocation9 + $0xa8] sm:$0xff]
    %v318 = vld [vmem:[#allocation9 + $0xb0] sm:$0xff]
    %v319 = vld [vmem:[#allocation9 + $0xb8] sm:$0xff]
    %v320 = vld [vmem:[#allocation9 + $0xc0] sm:$0xff]
    %v321 = vld [vmem:[#allocation9 + $0xc8] sm:$0xff]
    %v322 = vld [vmem:[#allocation9 + $0xd0] sm:$0xff]
    %v323 = vld [vmem:[#allocation9 + $0xd8] sm:$0xff]
    %v324 = vld [vmem:[#allocation9 + $0xe0] sm:$0xff]
    %v325 = vld [vmem:[#allocation9 + $0xe8] sm:$0xff]
    %v326 = vld [vmem:[#allocation9 + $0xf0] sm:$0xff]
    %v327 = vld [vmem:[#allocation9 + $0xf8] sm:$0xff]
    %v328 = vld [vmem:[%s4] sm:$0x3]
    %v330 = vlaneseq
    %v331 = vshrl.u32 %v330, 7
    %v332 = vsub.s32 0, %v331
    %v333 = vrot.slane %v328, %v332
    %v334 = vlaneseq
    %v335 = vshrl.u32 %v334, 7
    %v336 = vsub.s32 1, %v335
    %v337 = vrot.slane %v328, %v336
    %v341 = vunpack.c.l.b16 %v295
    %v342 = vunpack.c.h.b16 %v295
    %v343 = vpack.c.b16 %v341, %v341
    %v344 = vpack.c.b16 %v342, %v342
    %v379 = vunpack.c.l.b16 %v296
    %v380 = vunpack.c.h.b16 %v296
    %v381 = vunpack.c.l.b16 %v297
    %v382 = vunpack.c.h.b16 %v297
    %v383 = vunpack.c.l.b16 %v298
    %v384 = vunpack.c.h.b16 %v298
    %v385 = vunpack.c.l.b16 %v299
    %v386 = vunpack.c.h.b16 %v299
    %v387 = vunpack.c.l.b16 %v300
    %v388 = vunpack.c.h.b16 %v300
    %v389 = vunpack.c.l.b16 %v301
    %v390 = vunpack.c.h.b16 %v301
    %v391 = vunpack.c.l.b16 %v302
    %v392 = vunpack.c.h.b16 %v302
    %v393 = vunpack.c.l.b16 %v303
    %v394 = vunpack.c.h.b16 %v303
    %v395 = vunpack.c.l.b16 %v304
    %v396 = vunpack.c.h.b16 %v304
    %v397 = vunpack.c.l.b16 %v305
    %v398 = vunpack.c.h.b16 %v305
    %v399 = vunpack.c.l.b16 %v306
    %v400 = vunpack.c.h.b16 %v306
    %v401 = vunpack.c.l.b16 %v307
    %v402 = vunpack.c.h.b16 %v307
    %v403 = vunpack.c.l.b16 %v308
    %v404 = vunpack.c.h.b16 %v308
    %v405 = vunpack.c.l.b16 %v309
    %v406 = vunpack.c.h.b16 %v309
    %v407 = vunpack.c.l.b16 %v310
    %v408 = vunpack.c.h.b16 %v310
    %v409 = vunpack.c.l.b16 %v311
    %v410 = vunpack.c.h.b16 %v311
    %v411 = vunpack.c.l.b16 %v312
    %v412 = vunpack.c.h.b16 %v312
    %v413 = vunpack.c.l.b16 %v313
    %v414 = vunpack.c.h.b16 %v313
    %v415 = vunpack.c.l.b16 %v314
    %v416 = vunpack.c.h.b16 %v314
    %v417 = vunpack.c.l.b16 %v315
    %v418 = vunpack.c.h.b16 %v315
    %v419 = vunpack.c.l.b16 %v316
    %v420 = vunpack.c.h.b16 %v316
    %v421 = vunpack.c.l.b16 %v317
    %v422 = vunpack.c.h.b16 %v317
    %v423 = vunpack.c.l.b16 %v318
    %v424 = vunpack.c.h.b16 %v318
    %v425 = vunpack.c.l.b16 %v319
    %v426 = vunpack.c.h.b16 %v319
    %v427 = vunpack.c.l.b16 %v320
    %v428 = vunpack.c.h.b16 %v320
    %v429 = vunpack.c.l.b16 %v321
    %v430 = vunpack.c.h.b16 %v321
    %v431 = vunpack.c.l.b16 %v322
    %v432 = vunpack.c.h.b16 %v322
    %v433 = vunpack.c.l.b16 %v323
    %v434 = vunpack.c.h.b16 %v323
    %v435 = vunpack.c.l.b16 %v324
    %v436 = vunpack.c.h.b16 %v324
    %v437 = vunpack.c.l.b16 %v325
    %v438 = vunpack.c.h.b16 %v325
    %v439 = vunpack.c.l.b16 %v326
    %v440 = vunpack.c.h.b16 %v326
    %v441 = vunpack.c.l.b16 %v327
    %v442 = vunpack.c.h.b16 %v327
    %v443 = vpack.c.b16 %v381, %v379
    %v444 = vpack.c.b16 %v382, %v380
    %v445 = vpack.c.b16 %v385, %v383
    %v446 = vpack.c.b16 %v386, %v384
    %v447 = vpack.c.b16 %v389, %v387
    %v448 = vpack.c.b16 %v390, %v388
    %v449 = vpack.c.b16 %v393, %v391
    %v450 = vpack.c.b16 %v394, %v392
    %v451 = vpack.c.b16 %v397, %v395
    %v452 = vpack.c.b16 %v398, %v396
    %v453 = vpack.c.b16 %v401, %v399
    %v454 = vpack.c.b16 %v402, %v400
    %v455 = vpack.c.b16 %v405, %v403
    %v456 = vpack.c.b16 %v406, %v404
    %v457 = vpack.c.b16 %v409, %v407
    %v458 = vpack.c.b16 %v410, %v408
    %v459 = vpack.c.b16 %v413, %v411
    %v460 = vpack.c.b16 %v414, %v412
    %v461 = vpack.c.b16 %v417, %v415
    %v462 = vpack.c.b16 %v418, %v416
    %v463 = vpack.c.b16 %v421, %v419
    %v464 = vpack.c.b16 %v422, %v420
    %v465 = vpack.c.b16 %v425, %v423
    %v466 = vpack.c.b16 %v426, %v424
    %v467 = vpack.c.b16 %v429, %v427
    %v468 = vpack.c.b16 %v430, %v428
    %v469 = vpack.c.b16 %v433, %v431
    %v470 = vpack.c.b16 %v434, %v432
    %v471 = vpack.c.b16 %v437, %v435
    %v472 = vpack.c.b16 %v438, %v436
    %v473 = vpack.c.b16 %v441, %v439
    %v474 = vpack.c.b16 %v442, %v440
    %507 = vmatprep.subr.bf16.mxu0 %v444
    %508 = vmatpush1.bf16.msra.mxu0 %v443
    %509 = vmatprep.subr.bf16.mxu0 %v446
    %510 = vmatpush1.bf16.msra.mxu0 %v445
    %511 = vmatprep.subr.bf16.mxu0 %v448
    %512 = vmatpush1.bf16.msra.mxu0 %v447
    %513 = vmatprep.subr.bf16.mxu0 %v450
    %514 = vmatpush1.bf16.msra.mxu0 %v449
    %515 = vmatprep.subr.bf16.mxu0 %v452
    %516 = vmatpush1.bf16.msra.mxu0 %v451
    %517 = vmatprep.subr.bf16.mxu0 %v454
    %518 = vmatpush1.bf16.msra.mxu0 %v453
    %519 = vmatprep.subr.bf16.mxu0 %v456
    %520 = vmatpush1.bf16.msra.mxu0 %v455
    %521 = vmatprep.subr.bf16.mxu0 %v458
    %522 = vmatpush1.bf16.msra.mxu0 %v457
    %523 = vmatprep.subr.bf16.mxu0 %v460
    %524 = vmatpush1.bf16.msra.mxu0 %v459
    %525 = vmatprep.subr.bf16.mxu0 %v462
    %526 = vmatpush1.bf16.msra.mxu0 %v461
    %527 = vmatprep.subr.bf16.mxu0 %v464
    %528 = vmatpush1.bf16.msra.mxu0 %v463
    %529 = vmatprep.subr.bf16.mxu0 %v466
    %530 = vmatpush1.bf16.msra.mxu0 %v465
    %531 = vmatprep.subr.bf16.mxu0 %v468
    %532 = vmatpush1.bf16.msra.mxu0 %v467
    %533 = vmatprep.subr.bf16.mxu0 %v470
    %534 = vmatpush1.bf16.msra.mxu0 %v469
    %535 = vmatprep.subr.bf16.mxu0 %v472
    %536 = vmatpush1.bf16.msra.mxu0 %v471
    %537 = vmatprep.subr.bf16.mxu0 %v474
    %538 = vmatpush1.bf16.msra.mxu0 %v473
    %539 = vmatprep.mubr.bf16.mxu0 %v344
    %540 = vmatmul.mubr.bf16.gmra.mrb[0].mxu0 %v343
    %v541 = vpop.f32.mrb[0].mxu0
    %v542 = vadd.f32 %v333, %v541
    %v543 = vpop.f32.mrb[0].mxu0
    %v544 = vadd.f32 %v337, %v543
    %v545 = vpop.f32.mrb[0].mxu0
    %v546 = vpop.f32.mrb[0].mxu0
    %547 = vdwg.mxu0
    %548 = vst [vmem:[#allocation11] sm:$0xff] %v542
    %549 = vst [vmem:[#allocation11 + $0x8] sm:$0xff] %v544
    // Predicated region
    $region42: #{tpu_custom_call.1} parent=1 // pred_check
      _
    $region43: #{tpu_custom_call.1} parent=1 // pred_check_branch
      %551 = sbr.rel (0) target = $region45
    $region44: #{tpu_custom_call.1} parent=1 // pred_region
      %s553 = ssub.s32 256, 256
      %554 = vsyncadd [#allocation5], %s553
      %s556 = sshll.u32 [#allocation11], 4
      %s557 = int_to_ptr.vmem [resolvable:$true] %s556
      %559 = dma.vmem_to_hbm [thread:$0]  %s557, 256, %s5, [#allocation5]
    $region45: #{tpu_custom_call.1} parent=1 // pred_fallthru
      _
    // Predicated region
    $region46: #{tpu_custom_call.1} parent=1 // pred_check
      _
    $region47: #{tpu_custom_call.1} parent=1 // pred_check_branch
      %561 = sbr.rel (0) target = $region49
    $region48: #{tpu_custom_call.1} parent=1 // pred_region
      %562 = dma.done [#allocation5], 256
    $region49: #{tpu_custom_call.1} parent=1 // pred_fallthru
      _
    %563 = vsyncpa [#allocation4], 1
    %564 = vsyncpa [#allocation7], 1
    %565 = vsyncpa [#allocation10], 1
    %566 = vsyncpa [#allocation5], 1

// kernel: tpu_custom_call.1
$region0: #{tpu_custom_call.1}
  #allocation0 [shape = 'u32[]', space=smem, size = 0x4, offset = 0x4, fixed_abs, tag = 'smem constant byte address 0x4 - core index']
  #allocation1 [shape = 'u32[144,128]{1,0:T(1,128)}', space=vmem, size = 0x12000, scoped, tag = 'internal scratch']
  #allocation2 [shape = 'bf16[8,256]{1,0:T(8,128)(2,1)}', space=vmem, size = 0x1000, scoped, tag = 'scratch operand']
  %s0 = inlined_call_operand.hbm [shape: bf16[8,128], index: 0, kind: input, shape index: {}]
  %s1 = inlined_call_operand.hbm [shape: bf16[128,256], index: 1, kind: input, shape index: {}]
  %s2 = inlined_call_operand.hbm [shape: f32[3,256], index: 2, kind: input, shape index: {}]
  %s3 = inlined_call_operand.hbm [shape: bf16[256,256], index: 3, kind: input, shape index: {}]
  %s4 = inlined_call_operand.vmem [shape: f32[1,256], index: 4, kind: input, shape index: {}]
  %s5 = inlined_call_operand.hbm [shape: f32[8,256], index: 5, kind: output, shape index: {}]
  %s6 = sld [smem:[#allocation0]]
  $region50: #{tpu_custom_call.1} parent=0
    _
  %s8 = ssub.s32 1, %s6
  %s9 = scalar_select 0, %s8, %s6
  $region1: #{tpu_custom_call.1} parent=0
    #allocation3 [shape = 'u8[2048]{0}', space=vmem, size = 0x800, scoped, tag = 'input window, operand 0, single buffered']
    #allocation4 [shape = 's32[1]{0}', space=sflag, size = 0x4, scoped, tag = 'scoped memory for tpu_custom_call.1']
    #allocation5 [shape = 's32[1]{0}', space=sflag, size = 0x4, scoped, tag = 'scoped memory for tpu_custom_call.1']
    #allocation6 [shape = 'u8[65536]{0}', space=vmem, size = 0x10000, scoped, tag = 'input window, operand 1, single buffered']
    #allocation7 [shape = 's32[1]{0}', space=sflag, size = 0x4, scoped, tag = 'scoped memory for tpu_custom_call.1']
    #allocation8 [shape = 'u8[4096]{0}', space=vmem, size = 0x1000, scoped, tag = 'input window, operand 2, single buffered']
    #allocation9 [shape = 'u8[131072]{0}', space=vmem, size = 0x20000, scoped, tag = 'input window, operand 3, single buffered']
    #allocation10 [shape = 's32[1]{0}', space=sflag, size = 0x4, scoped, tag = 'scoped memory for tpu_custom_call.1']
    #allocation11 [shape = 'u8[8192]{0}', space=vmem, size = 0x2000, scoped, tag = 'output window, operand 0, single buffered']
    %10 = vsyncpa [#allocation4], 0
    %11 = vsyncpa [#allocation7], 0
    %12 = vsyncpa [#allocation10], 0
    %13 = vsyncpa [#allocation5], 0
    // Predicated region
    $region2: #{tpu_custom_call.1} parent=1 // pred_check
      _
    $region3: #{tpu_custom_call.1} parent=1 // pred_check_branch
      %15 = sbr.rel (0) target = $region5
    $region4: #{tpu_custom_call.1} parent=1 // pred_region
      %s17 = ssub.s32 64, 64
      %18 = vsyncadd [#allocation4], %s17
      %s20 = sshll.u32 [#allocation3], 4
      %s21 = int_to_ptr.vmem [resolvable:$true] %s20
      %23 = dma.hbm_to_vmem [thread:$0]  %s0, 64, %s21, [#allocation4]
    $region5: #{tpu_custom_call.1} parent=1 // pred_fallthru
      _
    // Predicated region
    $region6: #{tpu_custom_call.1} parent=1 // pred_check
      _
    $region7: #{tpu_custom_call.1} parent=1 // pred_check_branch
      %25 = sbr.rel (0) target = $region9
    $region8: #{tpu_custom_call.1} parent=1 // pred_region
      %s27 = ssub.s32 2048, 2048
      %28 = vsyncadd [#allocation7], %s27
      %s29 = sshll.u32 [#allocation6], 4
      %s30 = int_to_ptr.vmem [resolvable:$true] %s29
      %35 = dma.hbm_to_vmem [thread:$0]  %s1, 2048, %s30, [#allocation7], 128, 128, 8
    $region9: #{tpu_custom_call.1} parent=1 // pred_fallthru
      _
    // Predicated region
    $region10: #{tpu_custom_call.1} parent=1 // pred_check
      _
    $region11: #{tpu_custom_call.1} parent=1 // pred_check_branch
      %37 = sbr.rel (0) target = $region13
    $region12: #{tpu_custom_call.1} parent=1 // pred_region
      %s39 = ssub.s32 128, 128
      %40 = vsyncadd [#allocation7], %s39
      %s42 = sshll.u32 [#allocation8], 4
      %s43 = int_to_ptr.vmem [resolvable:$true] %s42
      %45 = dma.hbm_to_vmem [thread:$0]  %s2, 128, %s43, [#allocation7]
    $region13: #{tpu_custom_call.1} parent=1 // pred_fallthru
      _
    // Predicated region
    $region14: #{tpu_custom_call.1} parent=1 // pred_check
      _
    $region15: #{tpu_custom_call.1} parent=1 // pred_check_branch
      %47 = sbr.rel (0) target = $region17
    $region16: #{tpu_custom_call.1} parent=1 // pred_region
      %s49 = ssub.s32 4096, 4096
      %50 = vsyncadd [#allocation10], %s49
      %s51 = sshll.u32 [#allocation9], 4
      %s52 = int_to_ptr.vmem [resolvable:$true] %s51
      %57 = dma.hbm_to_vmem [thread:$0]  %s3, 4096, %s52, [#allocation10], 128, 128, 8
    $region17: #{tpu_custom_call.1} parent=1 // pred_fallthru
      _
    // Predicated region
    $region18: #{tpu_custom_call.1} parent=1 // pred_check
      _
    $region19: #{tpu_custom_call.1} parent=1 // pred_check_branch
      %59 = sbr.rel (0) target = $region21
    $region20: #{tpu_custom_call.1} parent=1 // pred_region
      _
    $region21: #{tpu_custom_call.1} parent=1 // pred_fallthru
      _
    // Predicated region
    $region22: #{tpu_custom_call.1} parent=1 // pred_check
      _
    $region23: #{tpu_custom_call.1} parent=1 // pred_check_branch
      %61 = sbr.rel (0) target = $region25
    $region24: #{tpu_custom_call.1} parent=1 // pred_region
      %62 = dma.done [#allocation4], 64
    $region25: #{tpu_custom_call.1} parent=1 // pred_fallthru
      _
    // Predicated region
    $region26: #{tpu_custom_call.1} parent=1 // pred_check
      _
    $region27: #{tpu_custom_call.1} parent=1 // pred_check_branch
      %64 = sbr.rel (0) target = $region29
    $region28: #{tpu_custom_call.1} parent=1 // pred_region
      %65 = dma.done [#allocation7], 2048
    $region29: #{tpu_custom_call.1} parent=1 // pred_fallthru
      _
    // Predicated region
    $region30: #{tpu_custom_call.1} parent=1 // pred_check
      _
    $region31: #{tpu_custom_call.1} parent=1 // pred_check_branch
      %67 = sbr.rel (0) target = $region33
    $region32: #{tpu_custom_call.1} parent=1 // pred_region
      %68 = dma.done [#allocation7], 128
    $region33: #{tpu_custom_call.1} parent=1 // pred_fallthru
      _
    // Predicated region
    $region34: #{tpu_custom_call.1} parent=1 // pred_check
      _
    $region35: #{tpu_custom_call.1} parent=1 // pred_check_branch
      %70 = sbr.rel (0) target = $region37
    $region36: #{tpu_custom_call.1} parent=1 // pred_region
      %71 = dma.done [#allocation10], 4096
    $region37: #{tpu_custom_call.1} parent=1 // pred_fallthru
      _
    %p73 = scmp.eq.s32.totalorder 0, 0
    // Predicated region
    $region38: #{tpu_custom_call.1} parent=1 // pred_check
      %p74 = pneg %p73
    $region39: #{tpu_custom_call.1} parent=1 // pred_check_branch
      %76 = sbr.rel (%p74) target = $region41
    $region40: #{tpu_custom_call.1} parent=1 // pred_region
      %v77 = vld [vmem:[#allocation3] sm:$0xf]
      %v78 = vld [vmem:[#allocation8] ss:$4 sm:$0x3]
      %s79 = scalar_lea.vmem [#allocation8], 1
      %v80 = vld [vmem:[%s79] ss:$4 sm:$0x3]
      %s81 = scalar_lea.vmem [#allocation8], 2
      %v82 = vld [vmem:[%s81] ss:$4 sm:$0x3]
      %v83 = vld [vmem:[#allocation6] sm:$0xff]
      %v84 = vld [vmem:[#allocation6 + $0x8] sm:$0xff]
      %v85 = vld [vmem:[#allocation6 + $0x10] sm:$0xff]
      %v86 = vld [vmem:[#allocation6 + $0x18] sm:$0xff]
      %v87 = vld [vmem:[#allocation6 + $0x20] sm:$0xff]
      %v88 = vld [vmem:[#allocation6 + $0x28] sm:$0xff]
      %v89 = vld [vmem:[#allocation6 + $0x30] sm:$0xff]
      %v90 = vld [vmem:[#allocation6 + $0x38] sm:$0xff]
      %v91 = vld [vmem:[#allocation6 + $0x40] sm:$0xff]
      %v92 = vld [vmem:[#allocation6 + $0x48] sm:$0xff]
      %v93 = vld [vmem:[#allocation6 + $0x50] sm:$0xff]
      %v94 = vld [vmem:[#allocation6 + $0x58] sm:$0xff]
      %v95 = vld [vmem:[#allocation6 + $0x60] sm:$0xff]
      %v96 = vld [vmem:[#allocation6 + $0x68] sm:$0xff]
      %v97 = vld [vmem:[#allocation6 + $0x70] sm:$0xff]
      %v98 = vld [vmem:[#allocation6 + $0x78] sm:$0xff]
      %v100 = vlaneseq
      %v101 = vshrl.u32 %v100, 7
      %v102 = vsub.s32 0, %v101
      %v103 = vrot.slane %v78, %v102
      %v104 = vlaneseq
      %v105 = vshrl.u32 %v104, 7
      %v106 = vsub.s32 1, %v105
      %v107 = vrot.slane %v78, %v106
      %v126 = vunpack.c.l.b16 %v83
      %v127 = vunpack.c.h.b16 %v83
      %v128 = vunpack.c.l.b16 %v84
      %v129 = vunpack.c.h.b16 %v84
      %v130 = vunpack.c.l.b16 %v85
      %v131 = vunpack.c.h.b16 %v85
      %v132 = vunpack.c.l.b16 %v86
      %v133 = vunpack.c.h.b16 %v86
      %v134 = vunpack.c.l.b16 %v87
      %v135 = vunpack.c.h.b16 %v87
      %v136 = vunpack.c.l.b16 %v88
      %v137 = vunpack.c.h.b16 %v88
      %v138 = vunpack.c.l.b16 %v89
      %v139 = vunpack.c.h.b16 %v89
      %v140 = vunpack.c.l.b16 %v90
      %v141 = vunpack.c.h.b16 %v90
      %v142 = vunpack.c.l.b16 %v91
      %v143 = vunpack.c.h.b16 %v91
      %v144 = vunpack.c.l.b16 %v92
      %v145 = vunpack.c.h.b16 %v92
      %v146 = vunpack.c.l.b16 %v93
      %v147 = vunpack.c.h.b16 %v93
      %v148 = vunpack.c.l.b16 %v94
      %v149 = vunpack.c.h.b16 %v94
      %v150 = vunpack.c.l.b16 %v95
      %v151 = vunpack.c.h.b16 %v95
      %v152 = vunpack.c.l.b16 %v96
      %v153 = vunpack.c.h.b16 %v96
      %v154 = vunpack.c.l.b16 %v97
      %v155 = vunpack.c.h.b16 %v97
      %v156 = vunpack.c.l.b16 %v98
      %v157 = vunpack.c.h.b16 %v98
      %v158 = vpack.c.b16 %v128, %v126
      %v159 = vpack.c.b16 %v129, %v127
      %v160 = vpack.c.b16 %v132, %v130
      %v161 = vpack.c.b16 %v133, %v131
      %v162 = vpack.c.b16 %v136, %v134
      %v163 = vpack.c.b16 %v137, %v135
      %v164 = vpack.c.b16 %v140, %v138
      %v165 = vpack.c.b16 %v141, %v139
      %v166 = vpack.c.b16 %v144, %v142
      %v167 = vpack.c.b16 %v145, %v143
      %v168 = vpack.c.b16 %v148, %v146
      %v169 = vpack.c.b16 %v149, %v147
      %v170 = vpack.c.b16 %v152, %v150
      %v171 = vpack.c.b16 %v153, %v151
      %v172 = vpack.c.b16 %v156, %v154
      %v173 = vpack.c.b16 %v157, %v155
      %190 = vmatprep.subr.bf16.mxu0 %v159
      %191 = vmatpush1.bf16.msra.mxu0 %v158
      %192 = vmatprep.subr.bf16.mxu0 %v161
      %193 = vmatpush1.bf16.msra.mxu0 %v160
      %194 = vmatprep.subr.bf16.mxu0 %v163
      %195 = vmatpush1.bf16.msra.mxu0 %v162
      %196 = vmatprep.subr.bf16.mxu0 %v165
      %197 = vmatpush1.bf16.msra.mxu0 %v164
      %198 = vmatprep.subr.bf16.mxu0 %v167
      %199 = vmatpush1.bf16.msra.mxu0 %v166
      %200 = vmatprep.subr.bf16.mxu0 %v169
      %201 = vmatpush1.bf16.msra.mxu0 %v168
      %202 = vmatprep.subr.bf16.mxu0 %v171
      %203 = vmatpush1.bf16.msra.mxu0 %v170
      %204 = vmatprep.subr.bf16.mxu0 %v173
      %205 = vmatpush1.bf16.msra.mxu0 %v172
      %206 = vmatprep.subr.bf16.mxu0 0
      %207 = vmatpush1.bf16.msra.mxu0 0
      %208 = vmatprep.subr.bf16.mxu0 0
      %209 = vmatpush1.bf16.msra.mxu0 0
      %210 = vmatprep.subr.bf16.mxu0 0
      %211 = vmatpush1.bf16.msra.mxu0 0
      %212 = vmatprep.subr.bf16.mxu0 0
      %213 = vmatpush1.bf16.msra.mxu0 0
      %214 = vmatprep.subr.bf16.mxu0 0
      %215 = vmatpush1.bf16.msra.mxu0 0
      %216 = vmatprep.subr.bf16.mxu0 0
      %217 = vmatpush1.bf16.msra.mxu0 0
      %218 = vmatprep.subr.bf16.mxu0 0
      %219 = vmatpush1.bf16.msra.mxu0 0
      %220 = vmatprep.subr.bf16.mxu0 0
      %221 = vmatpush1.bf16.msra.mxu0 0
      %222 = vmatprep.mubr.bf16.mxu0 0
      %223 = vmatmul.mubr.bf16.gmra.mrb[0].mxu0 %v77
      %v224 = vpop.f32.mrb[0].mxu0
      %v225 = vadd.f32 %v103, %v224
      %v226 = vpop.f32.mrb[0].mxu0
      %v227 = vadd.f32 %v107, %v226
      %v228 = vpop.f32.mrb[0].mxu0
      %v229 = vpop.f32.mrb[0].mxu0
      %230 = vdwg.mxu0
      %v231 = vmul.f32 %v225, 0.5
      %v232 = vmul.f32 %v227, 0.5
      %v233 = vmul.f32 %v225, 0.70710677
      %v234 = vmul.f32 %v227, 0.70710677
      %v235 = verf.f32.pop %v233
      %v236 = verf.f32.pop %v234
      %v237 = vadd.f32 %v235, 1.0
      %v238 = vadd.f32 %v236, 1.0
      %v239 = vmul.f32 %v231, %v237
      %v240 = vmul.f32 %v232, %v238
      %v241 = vadd.f32 %v239, %v240
      %242 = vadd.xlane.f32.xlu0 %v241
      %v243 = vpop.xlane.xlu0 %242
      %v244 = vmul.f32 %v239, %v239
      %v245 = vmul.f32 %v240, %v240
      %v246 = vadd.f32 %v244, %v245
      %247 = vadd.xlane.f32.xlu0 %v246
      %v248 = vpop.xlane.xlu0 %247
      %v249 = vmul.f32 %v243, 0.015625
      %v250 = vmul.f32 %v248, 0.015625
      %v251 = vmul.f32 %v249, %v249
      %v252 = vsub.f32 %v250, %v251
      %v253 = vmax.f32 %v252, 0.0
      %v254 = vadd.f32 %v253, 1e-12
      %v255 = vrsqrt.pop %v254
      %v256 = vsub.f32 %v239, %v249
      %v257 = vsub.f32 %v240, %v249
      %v258 = vmul.f32 %v256, %v255
      %v259 = vmul.f32 %v257, %v255
      %v261 = vlaneseq
      %v262 = vshrl.u32 %v261, 7
      %v263 = vsub.s32 0, %v262
      %v264 = vrot.slane %v80, %v263
      %v265 = vlaneseq
      %v266 = vshrl.u32 %v265, 7
      %v267 = vsub.s32 1, %v266
      %v268 = vrot.slane %v80, %v267
      %v271 = vmul.f32 %v258, %v264
      %v272 = vmul.f32 %v259, %v268
      %v274 = vlaneseq
      %v275 = vshrl.u32 %v274, 7
      %v276 = vsub.s32 0, %v275
      %v277 = vrot.slane %v82, %v276
      %v278 = vlaneseq
      %v279 = vshrl.u32 %v278, 7
      %v280 = vsub.s32 1, %v279
      %v281 = vrot.slane %v82, %v280
      %v284 = vadd.f32 %v271, %v277
      %v285 = vadd.f32 %v272, %v281
      %v286 = vpack.c.bf16 %v284, %v284
      %v287 = vpack.c.bf16 %v285, %v285
      %v290 = vunpack.c.l.b16 %v286
      %v291 = vunpack.c.l.b16 %v287
      %v292 = vpack.c.b16 %v291, %v290
      %294 = vst [vmem:[#allocation2] sm:$0xff] %v292
    $region41: #{tpu_custom_call.1} parent=1 // pred_fallthru
      _
    %v295 = vld [vmem:[#allocation2] sm:$0xff]
    %v296 = vld [vmem:[#allocation9] sm:$0xff]
    %v297 = vld [vmem:[#allocation9 + $0x8] sm:$0xff]
    %v298 = vld [vmem:[#allocation9 + $0x10] sm:$0xff]
    %v299 = vld [vmem:[#allocation9 + $0x18] sm:$0xff]
    %v300 = vld [vmem:[#allocation9 + $0x20] sm:$0xff]
    %v301 = vld [vmem:[#allocation9 + $0x28] sm:$0xff]
    %v302 = vld [vmem:[#allocation9 + $0x30] sm:$0xff]
    %v303 = vld [vmem:[#allocation9 + $0x38] sm:$0xff]
    %v304 = vld [vmem:[#allocation9 + $0x40] sm:$0xff]
    %v305 = vld [vmem:[#allocation9 + $0x48] sm:$0xff]
    %v306 = vld [vmem:[#allocation9 + $0x50] sm:$0xff]
    %v307 = vld [vmem:[#allocation9 + $0x58] sm:$0xff]
    %v308 = vld [vmem:[#allocation9 + $0x60] sm:$0xff]
    %v309 = vld [vmem:[#allocation9 + $0x68] sm:$0xff]
    %v310 = vld [vmem:[#allocation9 + $0x70] sm:$0xff]
    %v311 = vld [vmem:[#allocation9 + $0x78] sm:$0xff]
    %v312 = vld [vmem:[#allocation9 + $0x80] sm:$0xff]
    %v313 = vld [vmem:[#allocation9 + $0x88] sm:$0xff]
    %v314 = vld [vmem:[#allocation9 + $0x90] sm:$0xff]
    %v315 = vld [vmem:[#allocation9 + $0x98] sm:$0xff]
    %v316 = vld [vmem:[#allocation9 + $0xa0] sm:$0xff]
    %v317 = vld [vmem:[#allocation9 + $0xa8] sm:$0xff]
    %v318 = vld [vmem:[#allocation9 + $0xb0] sm:$0xff]
    %v319 = vld [vmem:[#allocation9 + $0xb8] sm:$0xff]
    %v320 = vld [vmem:[#allocation9 + $0xc0] sm:$0xff]
    %v321 = vld [vmem:[#allocation9 + $0xc8] sm:$0xff]
    %v322 = vld [vmem:[#allocation9 + $0xd0] sm:$0xff]
    %v323 = vld [vmem:[#allocation9 + $0xd8] sm:$0xff]
    %v324 = vld [vmem:[#allocation9 + $0xe0] sm:$0xff]
    %v325 = vld [vmem:[#allocation9 + $0xe8] sm:$0xff]
    %v326 = vld [vmem:[#allocation9 + $0xf0] sm:$0xff]
    %v327 = vld [vmem:[#allocation9 + $0xf8] sm:$0xff]
    %v328 = vld [vmem:[%s4] sm:$0x3]
    %v330 = vlaneseq
    %v331 = vshrl.u32 %v330, 7
    %v332 = vsub.s32 0, %v331
    %v333 = vrot.slane %v328, %v332
    %v334 = vlaneseq
    %v335 = vshrl.u32 %v334, 7
    %v336 = vsub.s32 1, %v335
    %v337 = vrot.slane %v328, %v336
    %v341 = vunpack.c.l.b16 %v295
    %v342 = vunpack.c.h.b16 %v295
    %v343 = vpack.c.b16 %v341, %v341
    %v344 = vpack.c.b16 %v342, %v342
    %v379 = vunpack.c.l.b16 %v296
    %v380 = vunpack.c.h.b16 %v296
    %v381 = vunpack.c.l.b16 %v297
    %v382 = vunpack.c.h.b16 %v297
    %v383 = vunpack.c.l.b16 %v298
    %v384 = vunpack.c.h.b16 %v298
    %v385 = vunpack.c.l.b16 %v299
    %v386 = vunpack.c.h.b16 %v299
    %v387 = vunpack.c.l.b16 %v300
    %v388 = vunpack.c.h.b16 %v300
    %v389 = vunpack.c.l.b16 %v301
    %v390 = vunpack.c.h.b16 %v301
    %v391 = vunpack.c.l.b16 %v302
    %v392 = vunpack.c.h.b16 %v302
    %v393 = vunpack.c.l.b16 %v303
    %v394 = vunpack.c.h.b16 %v303
    %v395 = vunpack.c.l.b16 %v304
    %v396 = vunpack.c.h.b16 %v304
    %v397 = vunpack.c.l.b16 %v305
    %v398 = vunpack.c.h.b16 %v305
    %v399 = vunpack.c.l.b16 %v306
    %v400 = vunpack.c.h.b16 %v306
    %v401 = vunpack.c.l.b16 %v307
    %v402 = vunpack.c.h.b16 %v307
    %v403 = vunpack.c.l.b16 %v308
    %v404 = vunpack.c.h.b16 %v308
    %v405 = vunpack.c.l.b16 %v309
    %v406 = vunpack.c.h.b16 %v309
    %v407 = vunpack.c.l.b16 %v310
    %v408 = vunpack.c.h.b16 %v310
    %v409 = vunpack.c.l.b16 %v311
    %v410 = vunpack.c.h.b16 %v311
    %v411 = vunpack.c.l.b16 %v312
    %v412 = vunpack.c.h.b16 %v312
    %v413 = vunpack.c.l.b16 %v313
    %v414 = vunpack.c.h.b16 %v313
    %v415 = vunpack.c.l.b16 %v314
    %v416 = vunpack.c.h.b16 %v314
    %v417 = vunpack.c.l.b16 %v315
    %v418 = vunpack.c.h.b16 %v315
    %v419 = vunpack.c.l.b16 %v316
    %v420 = vunpack.c.h.b16 %v316
    %v421 = vunpack.c.l.b16 %v317
    %v422 = vunpack.c.h.b16 %v317
    %v423 = vunpack.c.l.b16 %v318
    %v424 = vunpack.c.h.b16 %v318
    %v425 = vunpack.c.l.b16 %v319
    %v426 = vunpack.c.h.b16 %v319
    %v427 = vunpack.c.l.b16 %v320
    %v428 = vunpack.c.h.b16 %v320
    %v429 = vunpack.c.l.b16 %v321
    %v430 = vunpack.c.h.b16 %v321
    %v431 = vunpack.c.l.b16 %v322
    %v432 = vunpack.c.h.b16 %v322
    %v433 = vunpack.c.l.b16 %v323
    %v434 = vunpack.c.h.b16 %v323
    %v435 = vunpack.c.l.b16 %v324
    %v436 = vunpack.c.h.b16 %v324
    %v437 = vunpack.c.l.b16 %v325
    %v438 = vunpack.c.h.b16 %v325
    %v439 = vunpack.c.l.b16 %v326
    %v440 = vunpack.c.h.b16 %v326
    %v441 = vunpack.c.l.b16 %v327
    %v442 = vunpack.c.h.b16 %v327
    %v443 = vpack.c.b16 %v381, %v379
    %v444 = vpack.c.b16 %v382, %v380
    %v445 = vpack.c.b16 %v385, %v383
    %v446 = vpack.c.b16 %v386, %v384
    %v447 = vpack.c.b16 %v389, %v387
    %v448 = vpack.c.b16 %v390, %v388
    %v449 = vpack.c.b16 %v393, %v391
    %v450 = vpack.c.b16 %v394, %v392
    %v451 = vpack.c.b16 %v397, %v395
    %v452 = vpack.c.b16 %v398, %v396
    %v453 = vpack.c.b16 %v401, %v399
    %v454 = vpack.c.b16 %v402, %v400
    %v455 = vpack.c.b16 %v405, %v403
    %v456 = vpack.c.b16 %v406, %v404
    %v457 = vpack.c.b16 %v409, %v407
    %v458 = vpack.c.b16 %v410, %v408
    %v459 = vpack.c.b16 %v413, %v411
    %v460 = vpack.c.b16 %v414, %v412
    %v461 = vpack.c.b16 %v417, %v415
    %v462 = vpack.c.b16 %v418, %v416
    %v463 = vpack.c.b16 %v421, %v419
    %v464 = vpack.c.b16 %v422, %v420
    %v465 = vpack.c.b16 %v425, %v423
    %v466 = vpack.c.b16 %v426, %v424
    %v467 = vpack.c.b16 %v429, %v427
    %v468 = vpack.c.b16 %v430, %v428
    %v469 = vpack.c.b16 %v433, %v431
    %v470 = vpack.c.b16 %v434, %v432
    %v471 = vpack.c.b16 %v437, %v435
    %v472 = vpack.c.b16 %v438, %v436
    %v473 = vpack.c.b16 %v441, %v439
    %v474 = vpack.c.b16 %v442, %v440
    %507 = vmatprep.subr.bf16.mxu0 %v444
    %508 = vmatpush1.bf16.msra.mxu0 %v443
    %509 = vmatprep.subr.bf16.mxu0 %v446
    %510 = vmatpush1.bf16.msra.mxu0 %v445
    %511 = vmatprep.subr.bf16.mxu0 %v448
    %512 = vmatpush1.bf16.msra.mxu0 %v447
    %513 = vmatprep.subr.bf16.mxu0 %v450
    %514 = vmatpush1.bf16.msra.mxu0 %v449
    %515 = vmatprep.subr.bf16.mxu0 %v452
    %516 = vmatpush1.bf16.msra.mxu0 %v451
    %517 = vmatprep.subr.bf16.mxu0 %v454
    %518 = vmatpush1.bf16.msra.mxu0 %v453
    %519 = vmatprep.subr.bf16.mxu0 %v456
    %520 = vmatpush1.bf16.msra.mxu0 %v455
    %521 = vmatprep.subr.bf16.mxu0 %v458
    %522 = vmatpush1.bf16.msra.mxu0 %v457
    %523 = vmatprep.subr.bf16.mxu0 %v460
    %524 = vmatpush1.bf16.msra.mxu0 %v459
    %525 = vmatprep.subr.bf16.mxu0 %v462
    %526 = vmatpush1.bf16.msra.mxu0 %v461
    %527 = vmatprep.subr.bf16.mxu0 %v464
    %528 = vmatpush1.bf16.msra.mxu0 %v463
    %529 = vmatprep.subr.bf16.mxu0 %v466
    %530 = vmatpush1.bf16.msra.mxu0 %v465
    %531 = vmatprep.subr.bf16.mxu0 %v468
    %532 = vmatpush1.bf16.msra.mxu0 %v467
    %533 = vmatprep.subr.bf16.mxu0 %v470
    %534 = vmatpush1.bf16.msra.mxu0 %v469
    %535 = vmatprep.subr.bf16.mxu0 %v472
    %536 = vmatpush1.bf16.msra.mxu0 %v471
    %537 = vmatprep.subr.bf16.mxu0 %v474
    %538 = vmatpush1.bf16.msra.mxu0 %v473
    %539 = vmatprep.mubr.bf16.mxu0 %v344
    %540 = vmatmul.mubr.bf16.gmra.mrb[0].mxu0 %v343
    %v541 = vpop.f32.mrb[0].mxu0
    %v542 = vadd.f32 %v333, %v541
    %v543 = vpop.f32.mrb[0].mxu0
    %v544 = vadd.f32 %v337, %v543
    %v545 = vpop.f32.mrb[0].mxu0
    %v546 = vpop.f32.mrb[0].mxu0
    %547 = vdwg.mxu0
    %548 = vst [vmem:[#allocation11] sm:$0xff] %v542
    %549 = vst [vmem:[#allocation11 + $0x8] sm:$0xff] %v544
    // Predicated region
    $region42: #{tpu_custom_call.1} parent=1 // pred_check
      _
    $region43: #{tpu_custom_call.1} parent=1 // pred_check_branch
      %551 = sbr.rel (0) target = $region45
    $region44: #{tpu_custom_call.1} parent=1 // pred_region
      %s553 = ssub.s32 256, 256
      %554 = vsyncadd [#allocation5], %s553
      %s556 = sshll.u32 [#allocation11], 4
      %s557 = int_to_ptr.vmem [resolvable:$true] %s556
      %559 = dma.vmem_to_hbm [thread:$0]  %s557, 256, %s5, [#allocation5]
    $region45: #{tpu_custom_call.1} parent=1 // pred_fallthru
      _
    // Predicated region
    $region46: #{tpu_custom_call.1} parent=1 // pred_check
      _
    $region47: #{tpu_custom_call.1} parent=1 // pred_check_branch
      %561 = sbr.rel (0) target = $region49
    $region48: #{tpu_custom_call.1} parent=1 // pred_region
      %562 = dma.done [#allocation5], 256
    $region49: #{tpu_custom_call.1} parent=1 // pred_fallthru
      _
    %563 = vsyncpa [#allocation4], 1
    %564 = vsyncpa [#allocation7], 1
    %565 = vsyncpa [#allocation10], 1
    %566 = vsyncpa [#allocation5], 1

</llo_original>
